<compile_context>
chip_gen: v7x
topology: tpu7x:2x2x1
jax: 0.10.0
libtpu: 0.0.40
codegen_flags: <defaults>
</compile_context>

<pallas_src>
import functools

import jax
import jax.numpy as jnp
from jax.experimental import pallas as pl
from jax.experimental.pallas import tpu as pltpu


def _round_up(x, m):
    return ((x + m - 1) // m) * m


def _fused_projector_kernel(x_ref, w_ref, b_ref, o_ref, acc_ref):
    # x_ref : (tm, tk)      current (M, K) slab of the activations
    # w_ref : (tk, tn)      current (K, N) tile of the fused weights
    # b_ref : (1, tn)       fused bias tile (f32); index ignores k -> cached
    # o_ref : (tm, tn)      output tile (resident across the K axis)
    # acc   : (tm, tn) f32  accumulator scratch
    k = pl.program_id(2)

    @pl.when(k == 0)
    def _init():
        acc_ref[...] = jnp.zeros_like(acc_ref)

    acc_ref[...] += jnp.dot(
        x_ref[...], w_ref[...], preferred_element_type=jnp.float32
    )

    @pl.when(k == pl.num_programs(2) - 1)
    def _finalize():
        o_ref[...] = (acc_ref[...] + b_ref[...]).astype(o_ref.dtype)


@functools.partial(
    jax.jit, static_argnames=("compute_dtype", "max_tm", "max_tk", "max_tn")
)
def _fused_forward(x, weights, biases, compute_dtype=None,
                   max_tm=256, max_tk=512, max_tn=512):
    B, K = x.shape
    L, Kw, P = weights.shape
    assert K == Kw, "in_dim mismatch between x and weights"
    assert biases.shape == (L, 1, P)

    out_dtype = x.dtype
    N = L * P

    # Fuse the L Linear layers column-wise: W_all[:, l*P:(l+1)*P] == W_l.
    # TODO(synk): in a real deployment, pre-fuse/pad the weights once at init
    # instead of per call (here it is a one-pass transpose inside the jit).
    w_all = jnp.transpose(weights, (1, 0, 2)).reshape(K, N)
    b_all = biases.astype(jnp.float32).reshape(1, N)

    if compute_dtype is not None:
        x = x.astype(compute_dtype)
        w_all = w_all.astype(compute_dtype)

    # ---- tile selection / padding ---------------------------------------
    # N tile: multiple of 128 -> lane-dense, unmasked stores; capped for VMEM.
    tn = min(max_tn, _round_up(N, 128))
    N_pad = _round_up(N, tn)
    # K: single slab when the reduction is small, else stream 512-wide slabs.
    if K <= max_tk:
        tk, K_pad = K, K
    else:
        tk = max_tk
        K_pad = _round_up(K, tk)
    # M (batch): single block when small, else 8-aligned tiles.
    if B <= max_tm:
        tm, B_pad = B, B
    else:
        tm = max_tm
        B_pad = _round_up(B, tm)

    if N_pad != N:
        w_all = jnp.pad(w_all, ((0, 0), (0, N_pad - N)))
        b_all = jnp.pad(b_all, ((0, 0), (0, N_pad - N)))
    if K_pad != K:
        x = jnp.pad(x, ((0, 0), (0, K_pad - K)))
        w_all = jnp.pad(w_all, ((0, K_pad - K), (0, 0)))
    if B_pad != B:
        x = jnp.pad(x, ((0, B_pad - B), (0, 0)))

    m_tiles = B_pad // tm
    n_tiles = N_pad // tn
    k_tiles = K_pad // tk

    # Explicit scoped-VMEM budget: double-buffered x / W / bias / out tiles plus
    # the f32 accumulator, with 2x headroom.  Clamped to [16 MiB, 48 MiB].
    est = (
        2 * tm * tk * x.dtype.itemsize
        + 2 * tk * tn * w_all.dtype.itemsize
        + 2 * tn * 4
        + 2 * tm * tn * jnp.dtype(out_dtype).itemsize
        + tm * tn * 4
    )
    vmem_limit = int(min(max(2 * est, 16 * 1024 * 1024), 48 * 1024 * 1024))

    cost = pl.CostEstimate(
        flops=2 * B_pad * K_pad * N_pad,
        transcendentals=0,
        bytes_accessed=(
            B_pad * K_pad * x.dtype.itemsize
            + K_pad * N_pad * w_all.dtype.itemsize
            + N_pad * 4
            + B_pad * N_pad * jnp.dtype(out_dtype).itemsize
        ),
    )

    y = pl.pallas_call(
        _fused_projector_kernel,
        out_shape=jax.ShapeDtypeStruct((B_pad, N_pad), out_dtype),
        grid_spec=pltpu.PrefetchScalarGridSpec(
            num_scalar_prefetch=0,
            grid=(m_tiles, n_tiles, k_tiles),  # K (reduction) axis last
            in_specs=[
                pl.BlockSpec((tm, tk), lambda m, n, k: (m, k)),   # x slab
                pl.BlockSpec((tk, tn), lambda m, n, k: (k, n)),   # fused W tile
                pl.BlockSpec((1, tn), lambda m, n, k: (0, n)),    # fused bias
            ],
            out_specs=pl.BlockSpec((tm, tn), lambda m, n, k: (m, n)),
            scratch_shapes=[pltpu.VMEM((tm, tn), jnp.float32)],
        ),
        compiler_params=pltpu.CompilerParams(
            dimension_semantics=("parallel", "parallel", "arbitrary"),
            vmem_limit_bytes=vmem_limit,
        ),
        cost_estimate=cost,
    )(x, w_all, b_all)

    # Per-label split inside the jit (one slice/reshape, no host-side
    # per-label dispatches).
    y = y[:B, :N].reshape(B, L, P)
    return tuple(y[:, l, :] for l in range(L))


def multi_label_projector(x, weights, biases, *, compute_dtype=None,
                          max_tm=256, max_tk=512, max_tn=512):
    """x: (B, in_dim); weights: (L, in_dim, proj_dim); biases: (L, 1, proj_dim).

    Returns a list of L arrays of shape (B, proj_dim), matching the PyTorch
    module's forward (list of per-label projections).
    """
    return list(
        _fused_forward(
            x, weights, biases,
            compute_dtype=compute_dtype,
            max_tm=max_tm, max_tk=max_tk, max_tn=max_tn,
        )
    )


def _reference(x, weights, biases):
    # Plain-JAX reference of the PyTorch forward.
    return [x @ weights[l] + biases[l, 0] for l in range(weights.shape[0])]


if __name__ == "__main__":
    key = jax.random.PRNGKey(0)

    # --- Test 1: small shapes, single-tile path (f32 and bf16 streaming) ---
    batch, in_dim, proj_dim, num_labels = 8, 32, 64, 3
    kx, kw, kb = jax.random.split(key, 3)
    x = jax.random.normal(kx, (batch, in_dim), dtype=jnp.float32)
    weights = jax.random.normal(
        kw, (num_labels, in_dim, proj_dim), dtype=jnp.float32) * 0.05
    biases = jax.random.normal(
        kb, (num_labels, 1, proj_dim), dtype=jnp.float32) * 0.01

    refs = _reference(x, weights, biases)

    outs = multi_label_projector(x, weights, biases)
    outs = [jax.block_until_ready(o) for o in outs]
    for o, r in zip(outs, refs):
        assert o.shape == (batch, proj_dim)
        assert jnp.allclose(o, r, atol=1e-5, rtol=1e-5), "f32 mismatch vs reference"

    outs_bf16 = multi_label_projector(x, weights, biases,
                                      compute_dtype=jnp.bfloat16)
    outs_bf16 = [jax.block_until_ready(o) for o in outs_bf16]
    for o, r in zip(outs_bf16, refs):
        assert o.shape == (batch, proj_dim)
        assert jnp.allclose(o, r, atol=3e-2, rtol=3e-2), "bf16 mismatch vs reference"

    # --- Test 2: exercise the tiled/padded (M, N, K) path -------------------
    batch2, in_dim2, proj_dim2, num_labels2 = 20, 384, 96, 5
    kx2, kw2, kb2 = jax.random.split(jax.random.PRNGKey(1), 3)
    x2 = jax.random.normal(kx2, (batch2, in_dim2), dtype=jnp.float32)
    weights2 = jax.random.normal(
        kw2, (num_labels2, in_dim2, proj_dim2), dtype=jnp.float32) * 0.02
    biases2 = jax.random.normal(
        kb2, (num_labels2, 1, proj_dim2), dtype=jnp.float32) * 0.01

    refs2 = _reference(x2, weights2, biases2)
    outs2 = multi_label_projector(x2, weights2, biases2,
                                  max_tm=16, max_tk=128, max_tn=256)
    outs2 = [jax.block_until_ready(o) for o in outs2]
    for o, r in zip(outs2, refs2):
        assert o.shape == (batch2, proj_dim2)
        assert jnp.allclose(o, r, atol=1e-4, rtol=1e-4), "tiled-path mismatch"

    print("KERNEL_OK")
</pallas_src>

<mosaic_0001>
module attributes {stable_mosaic.version = 11 : i64} {
  func.func @_fused_projector_kernel(%arg0: i32, %arg1: i32, %arg2: i32, %arg3: memref<8x32xf32, #tpu.memory_space<vmem>>, %arg4: memref<32x256xf32, #tpu.memory_space<vmem>>, %arg5: memref<1x256xf32, #tpu.memory_space<vmem>>, %arg6: memref<8x256xf32, #tpu.memory_space<vmem>>, %arg7: memref<8x256xf32, #tpu.memory_space<vmem>>) attributes {dimension_semantics = [#tpu.dimension_semantics<parallel>, #tpu.dimension_semantics<parallel>, #tpu.dimension_semantics<arbitrary>], iteration_bounds = array<i64: 1, 1, 1>, scalar_prefetch = 0 : i64, scratch_operands = 1 : i64, tpu.core_type = #tpu.core_type<tc>, window_params = [{transform_indices = @transform_0, window_bounds = array<i64: 8, 32>}, {transform_indices = @transform_1, window_bounds = array<i64: 32, 256>}, {transform_indices = @transform_2, window_bounds = array<i64: 1, 256>}, {transform_indices = @transform_3, window_bounds = array<i64: 8, 256>}]} {
    %c0_i32 = arith.constant 0 : i32
    %0 = arith.cmpi eq, %arg2, %c0_i32 : i32
    %1 = arith.extui %0 : i1 to i32
    %c0_i32_0 = arith.constant 0 : i32
    %2 = arith.cmpi ne, %1, %c0_i32_0 : i32
    scf.if %2 {
      %cst_10 = arith.constant 0.000000e+00 : f32
      %12 = vector.broadcast %cst_10 : f32 to vector<8x256xf32>
      %c0_11 = arith.constant 0 : index
      %c0_12 = arith.constant 0 : index
      %13 = vector.load %arg7[%c0_11, %c0_12] : memref<8x256xf32, #tpu.memory_space<vmem>>, vector<8x256xf32>
      tpu.vector_store %arg7[%c0_11, %c0_12], %12 {strides = array<i32>} : memref<8x256xf32, #tpu.memory_space<vmem>>, vector<8x256xf32>,
    } else {
    }
    %c0 = arith.constant 0 : index
    %c0_1 = arith.constant 0 : index
    %3 = vector.load %arg7[%c0, %c0_1] : memref<8x256xf32, #tpu.memory_space<vmem>>, vector<8x256xf32>
    %c0_2 = arith.constant 0 : index
    %c0_3 = arith.constant 0 : index
    %4 = vector.load %arg3[%c0_2, %c0_3] : memref<8x32xf32, #tpu.memory_space<vmem>>, vector<8x32xf32>
    %c0_4 = arith.constant 0 : index
    %c0_5 = arith.constant 0 : index
    %5 = vector.load %arg4[%c0_4, %c0_5] : memref<32x256xf32, #tpu.memory_space<vmem>>, vector<32x256xf32>
    %cst = arith.constant dense<0.000000e+00> : vector<8x256xf32>
    %6 = tpu.matmul %4, %5, %cst {dimension_numbers = #tpu.dot_dimension_numbers<[1], [0], [0], [1], [0, 0, 1, 1], [], []>} : vector<8x32xf32>, vector<32x256xf32>, vector<8x256xf32> -> vector<8x256xf32>
    %7 = arith.addf %3, %6 : vector<8x256xf32>
    %c0_6 = arith.constant 0 : index
    %c0_7 = arith.constant 0 : index
    %8 = vector.load %arg7[%c0_6, %c0_7] : memref<8x256xf32, #tpu.memory_space<vmem>>, vector<8x256xf32>
    tpu.vector_store %arg7[%c0_6, %c0_7], %7 {strides = array<i32>} : memref<8x256xf32, #tpu.memory_space<vmem>>, vector<8x256xf32>,
    %c0_i32_8 = arith.constant 0 : i32
    %9 = arith.cmpi eq, %arg2, %c0_i32_8 : i32
    %10 = arith.extui %9 : i1 to i32
    %c0_i32_9 = arith.constant 0 : i32
    %11 = arith.cmpi ne, %10, %c0_i32_9 : i32
    scf.if %11 {
      %c0_10 = arith.constant 0 : index
      %c0_11 = arith.constant 0 : index
      %12 = vector.load %arg7[%c0_10, %c0_11] : memref<8x256xf32, #tpu.memory_space<vmem>>, vector<8x256xf32>
      %c0_12 = arith.constant 0 : index
      %c0_13 = arith.constant 0 : index
      %13 = vector.load %arg5[%c0_12, %c0_13] : memref<1x256xf32, #tpu.memory_space<vmem>>, vector<1x256xf32>
      %14 = vector.broadcast %13 : vector<1x256xf32> to vector<8x256xf32>
      %15 = arith.addf %12, %14 : vector<8x256xf32>
      %c0_14 = arith.constant 0 : index
      %c0_15 = arith.constant 0 : index
      %16 = vector.load %arg6[%c0_14, %c0_15] : memref<8x256xf32, #tpu.memory_space<vmem>>, vector<8x256xf32>
      tpu.vector_store %arg6[%c0_14, %c0_15], %15 {strides = array<i32>} : memref<8x256xf32, #tpu.memory_space<vmem>>, vector<8x256xf32>,
    } else {
    }
    return
  }
  func.func @transform_0(%arg0: i32, %arg1: i32, %arg2: i32) -> (i32, i32) {
    %c0_i32 = arith.constant 0 : i32
    return %arg0, %arg2 : i32, i32
  }
  func.func @transform_1(%arg0: i32, %arg1: i32, %arg2: i32) -> (i32, i32) {
    %c0_i32 = arith.constant 0 : i32
    return %arg2, %arg1 : i32, i32
  }
  func.func @transform_2(%arg0: i32, %arg1: i32, %arg2: i32) -> (i32, i32) {
    %c0_i32 = arith.constant 0 : i32
    %c0_i32_0 = arith.constant 0 : i32
    return %c0_i32, %arg1 : i32, i32
  }
  func.func @transform_3(%arg0: i32, %arg1: i32, %arg2: i32) -> (i32, i32) {
    %c0_i32 = arith.constant 0 : i32
    return %arg0, %arg1 : i32, i32
  }
}

</mosaic_0001>

<llo_original>
// kernel: _fused_forward.1
$region0: #{_fused_forward.1}
  #allocation0 [shape = 'u32[]', space=smem, size = 0x4, offset = 0x4, fixed_abs, tag = 'smem constant byte address 0x4 - core index']
  #allocation1 [shape = 'u32[144,128]{1,0:T(1,128)}', space=vmem, size = 0x12000, scoped, tag = 'internal scratch']
  #allocation2 [shape = 'f32[8,256]{1,0:T(8,128)}', space=vmem, size = 0x2000, scoped, tag = 'scratch operand']
  %s0 = inlined_call_operand.vmem [shape: f32[8,32], index: 0, kind: input, shape index: {}]
  %s1 = inlined_call_operand.vmem [shape: f32[32,256], index: 1, kind: input, shape index: {}]
  %s2 = inlined_call_operand.vmem [shape: f32[1,256], index: 2, kind: input, shape index: {}]
  %s3 = inlined_call_operand.vmem [shape: f32[8,256], index: 3, kind: output, shape index: {}]
  %s4 = sld [smem:[#allocation0]]
  $region30: #{_fused_forward.1} parent=0
    _
  %s6 = ssub.s32 1, %s4
  %s7 = scalar_select 0, %s6, %s4
  // Predicated region
  $region2: #{_fused_forward.1} parent=0 // pred_check
    _
  $region3: #{_fused_forward.1} parent=0 // pred_check_branch
    %9 = sbr.rel (0) target = $region5
  $region4: #{_fused_forward.1} parent=0 // pred_region
    _
  $region5: #{_fused_forward.1} parent=0 // pred_fallthru
    _
  // Predicated region
  $region6: #{_fused_forward.1} parent=0 // pred_check
    _
  $region7: #{_fused_forward.1} parent=0 // pred_check_branch
    %11 = sbr.rel (0) target = $region9
  $region8: #{_fused_forward.1} parent=0 // pred_region
    _
  $region9: #{_fused_forward.1} parent=0 // pred_fallthru
    _
  // Predicated region
  $region10: #{_fused_forward.1} parent=0 // pred_check
    _
  $region11: #{_fused_forward.1} parent=0 // pred_check_branch
    %13 = sbr.rel (0) target = $region13
  $region12: #{_fused_forward.1} parent=0 // pred_region
    _
  $region13: #{_fused_forward.1} parent=0 // pred_fallthru
    _
  %p14 = scmp.eq.s32.totalorder 0, 0
  // Predicated region
  $region14: #{_fused_forward.1} parent=0 // pred_check
    %p15 = pneg %p14
  $region15: #{_fused_forward.1} parent=0 // pred_check_branch
    %17 = sbr.rel (%p15) target = $region17
  $region16: #{_fused_forward.1} parent=0 // pred_region
    %18 = vst [vmem:[#allocation2] sm:$0xff] 0.0
    %19 = vst [vmem:[#allocation2 + $0x8] sm:$0xff] 0.0
  $region17: #{_fused_forward.1} parent=0 // pred_fallthru
    _
  %v20 = vld [vmem:[#allocation2] sm:$0xff]
  %v21 = vld [vmem:[#allocation2 + $0x8] sm:$0xff]
  %v22 = vld [vmem:[%s0] sm:$0xff]
  %v23 = vld [vmem:[%s1] sm:$0xff]
  %v24 = vld [vmem:[%s1 + $0x8] sm:$0xff]
  %v25 = vld [vmem:[%s1 + $0x10] sm:$0xff]
  %v26 = vld [vmem:[%s1 + $0x18] sm:$0xff]
  %v27 = vld [vmem:[%s1 + $0x20] sm:$0xff]
  %v28 = vld [vmem:[%s1 + $0x28] sm:$0xff]
  %v29 = vld [vmem:[%s1 + $0x30] sm:$0xff]
  %v30 = vld [vmem:[%s1 + $0x38] sm:$0xff]
  %vm31 = vcmask 261120
  %v33 = vsel %vm31, %v22, 0
  %35 = vmatprep.subr.mxu0 %v24
  %36 = vmatpush1.msra.mxu0 %v23
  %37 = vmatprep.subr.mxu0 %v26
  %38 = vmatpush1.msra.mxu0 %v25
  %39 = vmatprep.subr.mxu0 %v28
  %40 = vmatpush1.msra.mxu0 %v27
  %41 = vmatprep.subr.mxu0 %v30
  %42 = vmatpush1.msra.mxu0 %v29
  %43 = vmatprep.subr.mxu0 0.0
  %44 = vmatpush1.msra.mxu0 0.0
  %45 = vmatprep.subr.mxu0 0.0
  %46 = vmatpush1.msra.mxu0 0.0
  %47 = vmatprep.subr.mxu0 0.0
  %48 = vmatpush1.msra.mxu0 0.0
  %49 = vmatprep.subr.mxu0 0.0
  %50 = vmatpush1.msra.mxu0 0.0
  %51 = vmatprep.subr.mxu0 0.0
  %52 = vmatpush1.msra.mxu0 0.0
  %53 = vmatprep.subr.mxu0 0.0
  %54 = vmatpush1.msra.mxu0 0.0
  %55 = vmatprep.subr.mxu0 0.0
  %56 = vmatpush1.msra.mxu0 0.0
  %57 = vmatprep.subr.mxu0 0.0
  %58 = vmatpush1.msra.mxu0 0.0
  %59 = vmatprep.subr.mxu0 0.0
  %60 = vmatpush1.msra.mxu0 0.0
  %61 = vmatprep.subr.mxu0 0.0
  %62 = vmatpush1.msra.mxu0 0.0
  %63 = vmatprep.subr.mxu0 0.0
  %64 = vmatpush1.msra.mxu0 0.0
  %65 = vmatprep.subr.mxu0 0.0
  %66 = vmatpush1.msra.mxu0 0.0
  %67 = vmatprep.subr.mxu0 0.0
  %68 = vmatpush1.msra.mxu0 0.0
  %69 = vmatprep.subr.mxu0 0.0
  %70 = vmatpush1.msra.mxu0 0.0
  %71 = vmatprep.subr.mxu0 0.0
  %72 = vmatpush1.msra.mxu0 0.0
  %73 = vmatprep.subr.mxu0 0.0
  %74 = vmatpush1.msra.mxu0 0.0
  %75 = vmatprep.subr.mxu0 0.0
  %76 = vmatpush1.msra.mxu0 0.0
  %77 = vmatprep.subr.mxu0 0.0
  %78 = vmatpush1.msra.mxu0 0.0
  %79 = vmatprep.subr.mxu0 0.0
  %80 = vmatpush1.msra.mxu0 0.0
  %81 = vmatprep.subr.mxu0 0.0
  %82 = vmatpush1.msra.mxu0 0.0
  %83 = vmatprep.subr.mxu0 0.0
  %84 = vmatpush1.msra.mxu0 0.0
  %85 = vmatprep.subr.mxu0 0.0
  %86 = vmatpush1.msra.mxu0 0.0
  %87 = vmatprep.subr.mxu0 0.0
  %88 = vmatpush1.msra.mxu0 0.0
  %89 = vmatprep.subr.mxu0 0.0
  %90 = vmatpush1.msra.mxu0 0.0
  %91 = vmatprep.subr.mxu0 0.0
  %92 = vmatpush1.msra.mxu0 0.0
  %93 = vmatprep.subr.mxu0 0.0
  %94 = vmatpush1.msra.mxu0 0.0
  %95 = vmatprep.subr.mxu0 0.0
  %96 = vmatpush1.msra.mxu0 0.0
  %97 = vmatprep.subr.mxu0 0.0
  %98 = vmatpush1.msra.mxu0 0.0
  %99 = vmatprep.mubr.f32.mxu0 0.0
  %100 = vmatmul.mubr.f32.gmra.mrb[0].mxu0 %v33
  %v101 = vpop.f32.mrb[0].mxu0
  %v102 = vadd.f32 0.0, %v101
  %v103 = vpop.f32.mrb[0].mxu0
  %v104 = vadd.f32 0.0, %v103
  %105 = vdwg.mxu0
  %v106 = vadd.f32 %v20, %v102
  %v107 = vadd.f32 %v21, %v104
  %108 = vst [vmem:[#allocation2] sm:$0xff] %v106
  %109 = vst [vmem:[#allocation2 + $0x8] sm:$0xff] %v107
  // Predicated region
  $region18: #{_fused_forward.1} parent=0 // pred_check
    %p110 = pneg %p14
  $region19: #{_fused_forward.1} parent=0 // pred_check_branch
    %112 = sbr.rel (%p110) target = $region21
  $region20: #{_fused_forward.1} parent=0 // pred_region
    %v113 = vld [vmem:[#allocation2] sm:$0xff]
    %v114 = vld [vmem:[#allocation2 + $0x8] sm:$0xff]
    %v115 = vld [vmem:[%s2] sm:$0x3]
    %v117 = vlaneseq
    %v118 = vshrl.u32 %v117, 7
    %v119 = vsub.s32 0, %v118
    %v120 = vrot.slane %v115, %v119
    %v121 = vlaneseq
    %v122 = vshrl.u32 %v121, 7
    %v123 = vsub.s32 1, %v122
    %v124 = vrot.slane %v115, %v123
    %v127 = vadd.f32 %v113, %v120
    %v128 = vadd.f32 %v114, %v124
    %129 = vst [vmem:[%s3] sm:$0xff] %v127
    %130 = vst [vmem:[%s3 + $0x8] sm:$0xff] %v128
  $region21: #{_fused_forward.1} parent=0 // pred_fallthru
    _
  // Predicated region
  $region22: #{_fused_forward.1} parent=0 // pred_check
    _
  $region23: #{_fused_forward.1} parent=0 // pred_check_branch
    %132 = sbr.rel (0) target = $region25
  $region24: #{_fused_forward.1} parent=0 // pred_region
    _
  $region25: #{_fused_forward.1} parent=0 // pred_fallthru
    _
  // Predicated region
  $region26: #{_fused_forward.1} parent=0 // pred_check
    _
  $region27: #{_fused_forward.1} parent=0 // pred_check_branch
    %134 = sbr.rel (0) target = $region29
  $region28: #{_fused_forward.1} parent=0 // pred_region
    _
  $region29: #{_fused_forward.1} parent=0 // pred_fallthru
    _

</llo_original>
